<compile_context>
chip_gen: v5e
topology: v5e:2x2
jax: 0.10.0
libtpu: 0.0.40
codegen_flags: <defaults>
</compile_context>

<pallas_src>
import jax
import jax.numpy as jnp
from jax.experimental import pallas as pl
from jax.experimental.pallas import tpu as pltpu


def _round_up(x: int, m: int) -> int:
    return ((x + m - 1) // m) * m


def _make_decode_kernel(mean, std):
    m0, m1, m2, m3 = (float(v) for v in mean)
    s0, s1, s2, s3 = (float(v) for v in std)

    def kernel(a_ref, r_ref, o_ref):
        # a_ref / r_ref / o_ref: VMEM (4, TN).
        # Rows: anchors [x1, y1, x2, y2], regressions [dx, dy, dw, dh],
        # output [px1, py1, px2, py2]. Lanes (TN, multiple of 128) are boxes.
        ax1 = a_ref[0:1, :]
        ay1 = a_ref[1:2, :]
        ax2 = a_ref[2:3, :]
        ay2 = a_ref[3:4, :]

        w = ax2 - ax1
        h = ay2 - ay1
        cx = ax1 + 0.5 * w
        cy = ay1 + 0.5 * h

        dx = r_ref[0:1, :] * s0 + m0
        dy = r_ref[1:2, :] * s1 + m1
        dw = r_ref[2:3, :] * s2 + m2
        dh = r_ref[3:4, :] * s3 + m3

        pcx = cx + dx * w
        pcy = cy + dy * h
        half_pw = 0.5 * jnp.exp(dw) * w   # exp runs on the EUP slot (free vs VPU)
        half_ph = 0.5 * jnp.exp(dh) * h

        o_ref[...] = jnp.concatenate(
            [pcx - half_pw, pcy - half_ph, pcx + half_pw, pcy + half_ph], axis=0
        )

    return kernel


def generate_predict_boxes(
    anchors: jax.Array,
    regressions: jax.Array,
    mean=(0.0, 0.0, 0.0, 0.0),
    std=(0.1, 0.1, 0.2, 0.2),
    block_n: int = 16384,
) -> jax.Array:
    """Pallas implementation of generate_predict_boxes.forward(anchors, regressions)."""
    assert anchors.ndim == 3 and anchors.shape[-1] == 4
    assert regressions.shape == anchors.shape
    B, N, _ = anchors.shape

    # Lane-dense layout: coordinates on sublanes, boxes on lanes.
    a = jnp.transpose(anchors.astype(jnp.float32), (0, 2, 1))      # (B, 4, N)
    r = jnp.transpose(regressions.astype(jnp.float32), (0, 2, 1))  # (B, 4, N)

    tn = min(int(block_n), _round_up(N, 128))   # lane tile, always a multiple of 128
    n_pad = _round_up(N, tn)
    if n_pad != N:
        pad = ((0, 0), (0, 0), (0, n_pad - N))
        a = jnp.pad(a, pad)   # zero pad: exp(0)*0 stays finite, sliced off below
        r = jnp.pad(r, pad)

    grid = (B, n_pad // tn)
    spec = pl.BlockSpec((None, 4, tn), lambda b, n: (b, 0, n))

    out = pl.pallas_call(
        _make_decode_kernel(mean, std),
        out_shape=jax.ShapeDtypeStruct((B, 4, n_pad), jnp.float32),
        grid=grid,
        in_specs=[spec, spec],
        out_specs=spec,
        compiler_params=pltpu.CompilerParams(
            dimension_semantics=("parallel", "parallel")
        ),
    )(a, r)

    return jnp.transpose(out[:, :, :N], (0, 2, 1))                 # (B, N, 4)


def _generate_predict_boxes_ref(anchors, regressions,
                                mean=(0.0, 0.0, 0.0, 0.0),
                                std=(0.1, 0.1, 0.2, 0.2)):
    """Pure-JAX reference mirroring the PyTorch forward."""
    w = anchors[:, :, 2] - anchors[:, :, 0]
    h = anchors[:, :, 3] - anchors[:, :, 1]
    cx = anchors[:, :, 0] + 0.5 * w
    cy = anchors[:, :, 1] + 0.5 * h
    dx = regressions[:, :, 0] * std[0] + mean[0]
    dy = regressions[:, :, 1] * std[1] + mean[1]
    dw = regressions[:, :, 2] * std[2] + mean[2]
    dh = regressions[:, :, 3] * std[3] + mean[3]
    pcx = cx + dx * w
    pcy = cy + dy * h
    pw = jnp.exp(dw) * w
    ph = jnp.exp(dh) * h
    return jnp.stack(
        [pcx - 0.5 * pw, pcy - 0.5 * ph, pcx + 0.5 * pw, pcy + 0.5 * ph], axis=2
    )


if __name__ == "__main__":
    key = jax.random.PRNGKey(0)
    k1, k2, k3 = jax.random.split(key, 3)

    B, N = 2, 8
    xy1 = jax.random.uniform(k1, (B, N, 2), dtype=jnp.float32, minval=0.0, maxval=12.0)
    wh = jax.random.uniform(k2, (B, N, 2), dtype=jnp.float32, minval=1.0, maxval=8.0)
    anchors = jnp.concatenate([xy1, xy1 + wh], axis=-1)            # valid (x1,y1,x2,y2)
    regressions = 0.5 * jax.random.normal(k3, (B, N, 4), dtype=jnp.float32)

    out = generate_predict_boxes(anchors, regressions)
    out = jax.block_until_ready(out)

    ref = _generate_predict_boxes_ref(anchors, regressions)
    assert out.shape == (B, N, 4) and out.dtype == jnp.float32
    assert jnp.allclose(out, ref, atol=1e-4, rtol=1e-4), float(jnp.max(jnp.abs(out - ref)))

    print("KERNEL_OK")
</pallas_src>

<mosaic_0001>
module attributes {stable_mosaic.version = 11 : i64} {
  func.func @kernel(%arg0: i32, %arg1: i32, %arg2: memref<1x4x128xf32, #tpu.memory_space<vmem>>, %arg3: memref<1x4x128xf32, #tpu.memory_space<vmem>>, %arg4: memref<1x4x128xf32, #tpu.memory_space<vmem>>) attributes {dimension_semantics = [#tpu.dimension_semantics<parallel>, #tpu.dimension_semantics<parallel>], iteration_bounds = array<i64: 2, 1>, scalar_prefetch = 0 : i64, scratch_operands = 0 : i64, tpu.core_type = #tpu.core_type<tc>, window_params = [{transform_indices = @transform_0, window_bounds = array<i64: 1, 4, 128>}, {transform_indices = @transform_1, window_bounds = array<i64: 1, 4, 128>}, {transform_indices = @transform_2, window_bounds = array<i64: 1, 4, 128>}]} {
    %c0 = arith.constant 0 : index
    %c0_0 = arith.constant 0 : index
    %c0_1 = arith.constant 0 : index
    %0 = vector.load %arg2[%c0, %c0_0, %c0_1] : memref<1x4x128xf32, #tpu.memory_space<vmem>>, vector<1x1x128xf32>
    %1 = vector.shape_cast %0 : vector<1x1x128xf32> to vector<1x128xf32>
    %c0_2 = arith.constant 0 : index
    %c1 = arith.constant 1 : index
    %c0_3 = arith.constant 0 : index
    %2 = vector.load %arg2[%c0_2, %c1, %c0_3] : memref<1x4x128xf32, #tpu.memory_space<vmem>>, vector<1x1x128xf32>
    %3 = vector.shape_cast %2 : vector<1x1x128xf32> to vector<1x128xf32>
    %c0_4 = arith.constant 0 : index
    %c2 = arith.constant 2 : index
    %c0_5 = arith.constant 0 : index
    %4 = vector.load %arg2[%c0_4, %c2, %c0_5] : memref<1x4x128xf32, #tpu.memory_space<vmem>>, vector<1x1x128xf32>
    %5 = vector.shape_cast %4 : vector<1x1x128xf32> to vector<1x128xf32>
    %c0_6 = arith.constant 0 : index
    %c3 = arith.constant 3 : index
    %c0_7 = arith.constant 0 : index
    %6 = vector.load %arg2[%c0_6, %c3, %c0_7] : memref<1x4x128xf32, #tpu.memory_space<vmem>>, vector<1x1x128xf32>
    %7 = vector.shape_cast %6 : vector<1x1x128xf32> to vector<1x128xf32>
    %8 = arith.subf %5, %1 : vector<1x128xf32>
    %9 = arith.subf %7, %3 : vector<1x128xf32>
    %cst = arith.constant 5.000000e-01 : f32
    %10 = vector.broadcast %cst : f32 to vector<1x128xf32>
    %11 = arith.mulf %10, %8 : vector<1x128xf32>
    %12 = arith.addf %1, %11 : vector<1x128xf32>
    %cst_8 = arith.constant 5.000000e-01 : f32
    %13 = vector.broadcast %cst_8 : f32 to vector<1x128xf32>
    %14 = arith.mulf %13, %9 : vector<1x128xf32>
    %15 = arith.addf %3, %14 : vector<1x128xf32>
    %c0_9 = arith.constant 0 : index
    %c0_10 = arith.constant 0 : index
    %c0_11 = arith.constant 0 : index
    %16 = vector.load %arg3[%c0_9, %c0_10, %c0_11] : memref<1x4x128xf32, #tpu.memory_space<vmem>>, vector<1x1x128xf32>
    %17 = vector.shape_cast %16 : vector<1x1x128xf32> to vector<1x128xf32>
    %cst_12 = arith.constant 1.000000e-01 : f32
    %18 = vector.broadcast %cst_12 : f32 to vector<1x128xf32>
    %19 = arith.mulf %17, %18 : vector<1x128xf32>
    %cst_13 = arith.constant 0.000000e+00 : f32
    %20 = vector.broadcast %cst_13 : f32 to vector<1x128xf32>
    %21 = arith.addf %19, %20 : vector<1x128xf32>
    %c0_14 = arith.constant 0 : index
    %c1_15 = arith.constant 1 : index
    %c0_16 = arith.constant 0 : index
    %22 = vector.load %arg3[%c0_14, %c1_15, %c0_16] : memref<1x4x128xf32, #tpu.memory_space<vmem>>, vector<1x1x128xf32>
    %23 = vector.shape_cast %22 : vector<1x1x128xf32> to vector<1x128xf32>
    %cst_17 = arith.constant 1.000000e-01 : f32
    %24 = vector.broadcast %cst_17 : f32 to vector<1x128xf32>
    %25 = arith.mulf %23, %24 : vector<1x128xf32>
    %cst_18 = arith.constant 0.000000e+00 : f32
    %26 = vector.broadcast %cst_18 : f32 to vector<1x128xf32>
    %27 = arith.addf %25, %26 : vector<1x128xf32>
    %c0_19 = arith.constant 0 : index
    %c2_20 = arith.constant 2 : index
    %c0_21 = arith.constant 0 : index
    %28 = vector.load %arg3[%c0_19, %c2_20, %c0_21] : memref<1x4x128xf32, #tpu.memory_space<vmem>>, vector<1x1x128xf32>
    %29 = vector.shape_cast %28 : vector<1x1x128xf32> to vector<1x128xf32>
    %cst_22 = arith.constant 2.000000e-01 : f32
    %30 = vector.broadcast %cst_22 : f32 to vector<1x128xf32>
    %31 = arith.mulf %29, %30 : vector<1x128xf32>
    %cst_23 = arith.constant 0.000000e+00 : f32
    %32 = vector.broadcast %cst_23 : f32 to vector<1x128xf32>
    %33 = arith.addf %31, %32 : vector<1x128xf32>
    %c0_24 = arith.constant 0 : index
    %c3_25 = arith.constant 3 : index
    %c0_26 = arith.constant 0 : index
    %34 = vector.load %arg3[%c0_24, %c3_25, %c0_26] : memref<1x4x128xf32, #tpu.memory_space<vmem>>, vector<1x1x128xf32>
    %35 = vector.shape_cast %34 : vector<1x1x128xf32> to vector<1x128xf32>
    %cst_27 = arith.constant 2.000000e-01 : f32
    %36 = vector.broadcast %cst_27 : f32 to vector<1x128xf32>
    %37 = arith.mulf %35, %36 : vector<1x128xf32>
    %cst_28 = arith.constant 0.000000e+00 : f32
    %38 = vector.broadcast %cst_28 : f32 to vector<1x128xf32>
    %39 = arith.addf %37, %38 : vector<1x128xf32>
    %40 = arith.mulf %21, %8 : vector<1x128xf32>
    %41 = arith.addf %12, %40 : vector<1x128xf32>
    %42 = arith.mulf %27, %9 : vector<1x128xf32>
    %43 = arith.addf %15, %42 : vector<1x128xf32>
    %44 = math.exp %33 : vector<1x128xf32>
    %cst_29 = arith.constant 5.000000e-01 : f32
    %45 = vector.broadcast %cst_29 : f32 to vector<1x128xf32>
    %46 = arith.mulf %45, %44 : vector<1x128xf32>
    %47 = arith.mulf %46, %8 : vector<1x128xf32>
    %48 = math.exp %39 : vector<1x128xf32>
    %cst_30 = arith.constant 5.000000e-01 : f32
    %49 = vector.broadcast %cst_30 : f32 to vector<1x128xf32>
    %50 = arith.mulf %49, %48 : vector<1x128xf32>
    %51 = arith.mulf %50, %9 : vector<1x128xf32>
    %52 = arith.subf %41, %47 : vector<1x128xf32>
    %53 = arith.subf %43, %51 : vector<1x128xf32>
    %54 = arith.addf %41, %47 : vector<1x128xf32>
    %55 = arith.addf %43, %51 : vector<1x128xf32>
    %56 = tpu.concatenate %52, %53, %54, %55 in 0 : vector<1x128xf32>, vector<1x128xf32>, vector<1x128xf32>, vector<1x128xf32> -> vector<4x128xf32>
    %c0_31 = arith.constant 0 : index
    %c0_32 = arith.constant 0 : index
    %c0_33 = arith.constant 0 : index
    %57 = vector.load %arg4[%c0_31, %c0_32, %c0_33] : memref<1x4x128xf32, #tpu.memory_space<vmem>>, vector<1x4x128xf32>
    %58 = vector.shape_cast %57 : vector<1x4x128xf32> to vector<4x128xf32>
    %59 = vector.shape_cast %56 : vector<4x128xf32> to vector<1x4x128xf32>
    tpu.vector_store %arg4[%c0_31, %c0_32, %c0_33], %59 {strides = array<i32>} : memref<1x4x128xf32, #tpu.memory_space<vmem>>, vector<1x4x128xf32>,
    return
  }
  func.func @transform_0(%arg0: i32, %arg1: i32) -> (i32, i32, i32) {
    %c0_i32 = arith.constant 0 : i32
    %c0_i32_0 = arith.constant 0 : i32
    return %arg0, %c0_i32, %arg1 : i32, i32, i32
  }
  func.func @transform_1(%arg0: i32, %arg1: i32) -> (i32, i32, i32) {
    %c0_i32 = arith.constant 0 : i32
    %c0_i32_0 = arith.constant 0 : i32
    return %arg0, %c0_i32, %arg1 : i32, i32, i32
  }
  func.func @transform_2(%arg0: i32, %arg1: i32) -> (i32, i32, i32) {
    %c0_i32 = arith.constant 0 : i32
    %c0_i32_0 = arith.constant 0 : i32
    return %arg0, %c0_i32, %arg1 : i32, i32, i32
  }
}

</mosaic_0001>

<llo_original>
// kernel: tpu_custom_call.1
$region0: #{tpu_custom_call.1}
  #allocation0 [shape = 'u32[]', space=smem, size = 0x4, offset = 0x4, fixed_abs, tag = 'smem constant byte address 0x4 - core index']
  #allocation1 [shape = 'u32[72,128]{1,0:T(1,128)}', space=vmem, size = 0x9000, scoped, tag = 'internal scratch']
  %s0 = inlined_call_operand.hbm [shape: f32[2,4,128], index: 0, kind: input, shape index: {}]
  %s1 = inlined_call_operand.hbm [shape: f32[2,4,128], index: 1, kind: input, shape index: {}]
  %s2 = inlined_call_operand.hbm [shape: f32[2,4,128], index: 2, kind: output, shape index: {}]
  %s3 = sld [smem:[#allocation0]]
  $region49: #{tpu_custom_call.1} parent=0
    _
  %s5 = ssub.s32 1, %s3
  %s6 = scalar_select 0, %s5, %s3
  $region1: #{tpu_custom_call.1} parent=0
    #allocation2 [shape = 'u8[4096]{0}', space=vmem, size = 0x1000, scoped, tag = 'input window, operand 0']
    #allocation3 [shape = 's32[2]{0}', space=sflag, size = 0x8, scoped, tag = 'scoped memory for tpu_custom_call.1']
    #allocation4 [shape = 's32[2]{0}', space=sflag, size = 0x8, scoped, tag = 'scoped memory for tpu_custom_call.1']
    #allocation5 [shape = 'u8[4096]{0}', space=vmem, size = 0x1000, scoped, tag = 'input window, operand 1']
    #allocation6 [shape = 's32[2]{0}', space=sflag, size = 0x8, scoped, tag = 'scoped memory for tpu_custom_call.1']
    #allocation7 [shape = 'u8[4096]{0}', space=vmem, size = 0x1000, scoped, tag = 'output window, operand 0']
    %7 = vsyncpa [#allocation3], 0
    %s8 = scalar_lea.sflag [#allocation3], 1
    %9 = vsyncpa %s8, 0
    %10 = vsyncpa [#allocation6], 0
    %s11 = scalar_lea.sflag [#allocation6], 1
    %12 = vsyncpa %s11, 0
    %13 = vsyncpa [#allocation4], 0
    %s14 = scalar_lea.sflag [#allocation4], 1
    %15 = vsyncpa %s14, 0
    loop: start=0, step=1, limit=4
    $region2: #{tpu_custom_call.1} parent=1 // loop_pre_header
      _
    $region3: #{tpu_custom_call.1} parent=1 // loop_header
      %s17 = sphi 0, %s21
      %p18 = scmp.ge.s32.totalorder %s17, 4
      %s24 = sphi 0, %s36
      %s25 = sphi 0, %s32
      %s26 = sphi 0, %s24
      %s27 = sphi 0, %s25
      %s28 = sphi 0, %s26
      %s29 = sphi 0, %s27
      %s41 = sphi 0, %s43
      %s44 = sphi 0, %s41
      %s45 = sphi 0, %s44
      %s61 = sphi 0, %s45
      %s69 = sphi 0, %s71
      %s72 = sphi 0, %s69
      %s73 = sphi 0, %s72
      %s89 = sphi 0, %s73
      %s97 = sphi 0, %s99
      %s100 = sphi 0, %s97
      %s101 = sphi 0, %s100
      %s117 = sphi 0, %s101
    $region4: #{tpu_custom_call.1} parent=1 // loop_header_branch
      %20 = sbr.rel (%p18) target = $region8
    $region5: #{tpu_custom_call.1} parent=1 // loop_body
      %s22 = ssub.s32 %s17, 1
      %s23 = ssub.s32 %s17, 2
      %s30 = sadd.s32 1, %s25
      %p31 = scmp.ge.s32.totalorder %s30, 1
      %s32 = scalar_select %p31, 0, %s30
      %s33 = sadd.s32 1, %s24
      %s34 = scalar_select %p31, %s33, %s24
      %p35 = scmp.ge.s32.totalorder %s34, 2
      %s36 = scalar_select %p35, 0, %s34
      %s37 = ssub.s32 %s24, %s36
      %s38 = ssub.s32 %s25, %s32
      %s39 = sor.u32 %s37, %s38
      %p40 = scmp.eq.s32.totalorder %s39, 0
      %s42 = sadd.s32 %s41, 1
      %s43 = scalar_select %p40, %s41, %s42
      %p46 = pneg %p40
      %p47 = scmp.eq.s32.totalorder %s17, 1
      %p48 = por %p46, %p47
      %p49 = scmp.ne.s32.totalorder %s41, %s44
      %p50 = scmp.eq.s32.totalorder %s17, 0
      %p51 = por %p49, %p50
      %p52 = scmp.ne.s32.totalorder %s41, %s44
      %p53 = scmp.eq.s32.totalorder %s22, 1
      %p54 = por %p52, %p53
      %p55 = scmp.ne.s32.totalorder %s44, %s45
      %p56 = scmp.eq.s32.totalorder %s22, 0
      %p57 = por %p55, %p56
      %p58 = scmp.ne.s32.totalorder %s44, %s45
      %p59 = scmp.eq.s32.totalorder %s23, 1
      %p60 = por %p58, %p59
      %p62 = scmp.ne.s32.totalorder %s45, %s61
      %p63 = scmp.eq.s32.totalorder %s23, 0
      %p64 = por %p62, %p63
      %s65 = ssub.s32 %s24, %s36
      %s66 = ssub.s32 %s25, %s32
      %s67 = sor.u32 %s65, %s66
      %p68 = scmp.eq.s32.totalorder %s67, 0
      %s70 = sadd.s32 %s69, 1
      %s71 = scalar_select %p68, %s69, %s70
      %p74 = pneg %p68
      %p75 = scmp.eq.s32.totalorder %s17, 1
      %p76 = por %p74, %p75
      %p77 = scmp.ne.s32.totalorder %s69, %s72
      %p78 = scmp.eq.s32.totalorder %s17, 0
      %p79 = por %p77, %p78
      %p80 = scmp.ne.s32.totalorder %s69, %s72
      %p81 = scmp.eq.s32.totalorder %s22, 1
      %p82 = por %p80, %p81
      %p83 = scmp.ne.s32.totalorder %s72, %s73
      %p84 = scmp.eq.s32.totalorder %s22, 0
      %p85 = por %p83, %p84
      %p86 = scmp.ne.s32.totalorder %s72, %s73
      %p87 = scmp.eq.s32.totalorder %s23, 1
      %p88 = por %p86, %p87
      %p90 = scmp.ne.s32.totalorder %s73, %s89
      %p91 = scmp.eq.s32.totalorder %s23, 0
      %p92 = por %p90, %p91
      %s93 = ssub.s32 %s24, %s36
      %s94 = ssub.s32 %s25, %s32
      %s95 = sor.u32 %s93, %s94
      %p96 = scmp.eq.s32.totalorder %s95, 0
      %s98 = sadd.s32 %s97, 1
      %s99 = scalar_select %p96, %s97, %s98
      %p102 = pneg %p96
      %p103 = scmp.eq.s32.totalorder %s17, 1
      %p104 = por %p102, %p103
      %p105 = scmp.ne.s32.totalorder %s97, %s100
      %p106 = scmp.eq.s32.totalorder %s17, 0
      %p107 = por %p105, %p106
      %p108 = scmp.ne.s32.totalorder %s97, %s100
      %p109 = scmp.eq.s32.totalorder %s22, 1
      %p110 = por %p108, %p109
      %p111 = scmp.ne.s32.totalorder %s100, %s101
      %p112 = scmp.eq.s32.totalorder %s22, 0
      %p113 = por %p111, %p112
      %p114 = scmp.ne.s32.totalorder %s100, %s101
      %p115 = scmp.eq.s32.totalorder %s23, 1
      %p116 = por %p114, %p115
      %p118 = scmp.ne.s32.totalorder %s101, %s117
      %p119 = scmp.eq.s32.totalorder %s23, 0
      %p120 = por %p118, %p119
      %p121 = scmp.le.s32.totalorder 1, %s17
      %p122 = scmp.lt.s32.totalorder %s17, 3
      %p123 = pnand %p121, %p122
      %p124 = pneg %p123
      // Predicated region
      $region9: #{tpu_custom_call.1} parent=5 // pred_check
        _
      $region10: #{tpu_custom_call.1} parent=5 // pred_check_branch
        %126 = sbr.rel (%p123) target = $region12
      $region11: #{tpu_custom_call.1} parent=5 // pred_region
        %s127 = ssub.s32 %s17, 1
      $region12: #{tpu_custom_call.1} parent=5 // pred_fallthru
        _
      %p128 = scmp.lt.s32.totalorder %s17, 2
      // Predicated region
      $region13: #{tpu_custom_call.1} parent=5 // pred_check
        %p129 = pneg %p128
      $region14: #{tpu_custom_call.1} parent=5 // pred_check_branch
        %131 = sbr.rel (%p129) target = $region16
      $region15: #{tpu_custom_call.1} parent=5 // pred_region
        // Predicated region
        $region17: #{tpu_custom_call.1} parent=15 // pred_check
          %p132 = pneg %p51
        $region18: #{tpu_custom_call.1} parent=15 // pred_check_branch
          %134 = sbr.rel (%p132) target = $region20
        $region19: #{tpu_custom_call.1} parent=15 // pred_region
          %s135 = sand.u32 %s41, 1
          %s136 = scalar_lea.sflag [#allocation3], %s135
          %s137 = sand.u32 %s41, 1
          %s138 = smul.addr %s137, 4
          %s139 = scalar_lea.vmem [#allocation2], %s138
          %141 = vsyncadd %s136, 0
          %s142 = sadd.s32 %s25, %s24
          %s143 = smul.addr %s142, 4
          %s144 = scalar_lea.hbm %s0, %s143
          %s146 = sshll.u32 %s144, 4
          %s147 = int_to_ptr.hbm [resolvable:$true] %s146
          %s148 = sshll.u32 %s139, 4
          %s149 = int_to_ptr.vmem [resolvable:$true] %s148
          %151 = dma.hbm_to_vmem [thread:$0]  %s147, 64, %s149, %s136
        $region20: #{tpu_custom_call.1} parent=15 // pred_fallthru
          _
        // Predicated region
        $region21: #{tpu_custom_call.1} parent=15 // pred_check
          %p152 = pneg %p79
        $region22: #{tpu_custom_call.1} parent=15 // pred_check_branch
          %154 = sbr.rel (%p152) target = $region24
        $region23: #{tpu_custom_call.1} parent=15 // pred_region
          %s155 = sand.u32 %s69, 1
          %s156 = scalar_lea.sflag [#allocation6], %s155
          %s157 = sand.u32 %s69, 1
          %s158 = smul.addr %s157, 4
          %s159 = scalar_lea.vmem [#allocation5], %s158
          %161 = vsyncadd %s156, 0
          %s162 = sadd.s32 %s25, %s24
          %s163 = smul.addr %s162, 4
          %s164 = scalar_lea.hbm %s1, %s163
          %s166 = sshll.u32 %s164, 4
          %s167 = int_to_ptr.hbm [resolvable:$true] %s166
          %s168 = sshll.u32 %s159, 4
          %s169 = int_to_ptr.vmem [resolvable:$true] %s168
          %171 = dma.hbm_to_vmem [thread:$0]  %s167, 64, %s169, %s156
        $region24: #{tpu_custom_call.1} parent=15 // pred_fallthru
          _
      $region16: #{tpu_custom_call.1} parent=5 // pred_fallthru
        _
      %p172 = scmp.le.s32.totalorder 1, %s17
      %p173 = scmp.lt.s32.totalorder %s17, 3
      %p174 = pnand %p172, %p173
      %p175 = pneg %p174
      // Predicated region
      $region25: #{tpu_custom_call.1} parent=5 // pred_check
        _
      $region26: #{tpu_custom_call.1} parent=5 // pred_check_branch
        %177 = sbr.rel (%p174) target = $region28
      $region27: #{tpu_custom_call.1} parent=5 // pred_region
        %s178 = ssub.s32 %s17, 1
        %s179 = sand.u32 %s44, 1
        %s180 = scalar_lea.sflag [#allocation3], %s179
        %s181 = sand.u32 %s44, 1
        %s182 = smul.addr %s181, 4
        %s183 = scalar_lea.vmem [#allocation2], %s182
        // Predicated region
        $region29: #{tpu_custom_call.1} parent=27 // pred_check
          %p184 = pneg %p57
        $region30: #{tpu_custom_call.1} parent=27 // pred_check_branch
          %186 = sbr.rel (%p184) target = $region32
        $region31: #{tpu_custom_call.1} parent=27 // pred_region
          %188 = dma.done %s180, 64
        $region32: #{tpu_custom_call.1} parent=27 // pred_fallthru
          _
        %s189 = sand.u32 %s72, 1
        %s190 = scalar_lea.sflag [#allocation6], %s189
        %s191 = sand.u32 %s72, 1
        %s192 = smul.addr %s191, 4
        %s193 = scalar_lea.vmem [#allocation5], %s192
        // Predicated region
        $region33: #{tpu_custom_call.1} parent=27 // pred_check
          %p194 = pneg %p85
        $region34: #{tpu_custom_call.1} parent=27 // pred_check_branch
          %196 = sbr.rel (%p194) target = $region36
        $region35: #{tpu_custom_call.1} parent=27 // pred_region
          %198 = dma.done %s190, 64
        $region36: #{tpu_custom_call.1} parent=27 // pred_fallthru
          _
        %s199 = sand.u32 %s44, 1
        %s200 = scalar_lea.sflag [#allocation3], %s199
        %s201 = sand.u32 %s44, 1
        %s202 = smul.addr %s201, 4
        %s203 = scalar_lea.vmem [#allocation2], %s202
        %p204 = pneg %p57
        %p205 = pneg %p54
        %s206 = sand.u32 %s72, 1
        %s207 = scalar_lea.sflag [#allocation6], %s206
        %s208 = sand.u32 %s72, 1
        %s209 = smul.addr %s208, 4
        %s210 = scalar_lea.vmem [#allocation5], %s209
        %p211 = pneg %p85
        %p212 = pneg %p82
        %p213 = pneg %p113
        %p214 = pneg %p110
        %s215 = sand.u32 %s100, 1
        %s216 = scalar_lea.sflag [#allocation4], %s215
        %s217 = sand.u32 %s100, 1
        %s218 = smul.addr %s217, 4
        %s219 = scalar_lea.vmem [#allocation7], %s218
        %v220 = vld [vmem:[%s183] sm:$0x1]
        %v221 = vld [vmem:[%s183 + $0x1] sm:$0x1]
        %v222 = vld [vmem:[%s183 + $0x2] sm:$0x1]
        %v223 = vld [vmem:[%s183 + $0x3] sm:$0x1]
        %v224 = vsub.f32 %v222, %v220
        %v225 = vsub.f32 %v223, %v221
        %v226 = vmul.f32 %v224, 0.5
        %v227 = vadd.f32 %v220, %v226
        %v228 = vmul.f32 %v225, 0.5
        %v229 = vadd.f32 %v221, %v228
        %v230 = vld [vmem:[%s193] sm:$0x1]
        %v231 = vmul.f32 %v230, 0.1
        %v232 = vadd.f32 %v231, 0.0
        %v233 = vld [vmem:[%s193 + $0x1] sm:$0x1]
        %v234 = vmul.f32 %v233, 0.1
        %v235 = vadd.f32 %v234, 0.0
        %v236 = vld [vmem:[%s193 + $0x2] sm:$0x1]
        %v237 = vmul.f32 %v236, 0.2
        %v238 = vadd.f32 %v237, 0.0
        %v239 = vld [vmem:[%s193 + $0x3] sm:$0x1]
        %v240 = vmul.f32 %v239, 0.2
        %v241 = vadd.f32 %v240, 0.0
        %v242 = vmul.f32 %v232, %v224
        %v243 = vadd.f32 %v227, %v242
        %v244 = vmul.f32 %v235, %v225
        %v245 = vadd.f32 %v229, %v244
        %v246 = vmul.f32 %v238, 1.442695
        %v247 = vpow.pop %v246
        %v248 = vmul.f32 %v247, 0.5
        %v249 = vmul.f32 %v248, %v224
        %v250 = vmul.f32 %v241, 1.442695
        %v251 = vpow.pop %v250
        %v252 = vmul.f32 %v251, 0.5
        %v253 = vmul.f32 %v252, %v225
        %v254 = vsub.f32 %v243, %v249
        %v255 = vsub.f32 %v245, %v253
        %v256 = vadd.f32 %v243, %v249
        %v257 = vadd.f32 %v245, %v253
        %v259 = vrot.slane %v255, 7
        %v262 = vrot.slane %v256, 6
        %v265 = vrot.slane %v257, 5
        %vm267 = vcmask 1040384
        %v268 = vsel %vm267, %v254, %v259
        %vm269 = vcmask 1041408
        %v270 = vsel %vm269, %v268, %v262
        %vm271 = vcmask 1042432
        %v272 = vsel %vm271, %v270, %v265
        %273 = vst [vmem:[%s219] sm:$0xf] %v272
        %s274 = sand.u32 %s100, 1
        %s275 = scalar_lea.sflag [#allocation4], %s274
        %s276 = sand.u32 %s100, 1
        %s277 = smul.addr %s276, 4
        %s278 = scalar_lea.vmem [#allocation7], %s277
        // Predicated region
        $region37: #{tpu_custom_call.1} parent=27 // pred_check
          %p279 = pneg %p110
        $region38: #{tpu_custom_call.1} parent=27 // pred_check_branch
          %281 = sbr.rel (%p279) target = $region40
        $region39: #{tpu_custom_call.1} parent=27 // pred_region
          %283 = vsyncadd %s275, 0
          %s284 = sadd.s32 %s27, %s26
          %s285 = smul.addr %s284, 4
          %s286 = scalar_lea.hbm %s2, %s285
          %s288 = sshll.u32 %s278, 4
          %s289 = int_to_ptr.vmem [resolvable:$true] %s288
          %s290 = sshll.u32 %s286, 4
          %s291 = int_to_ptr.hbm [resolvable:$true] %s290
          %293 = dma.vmem_to_hbm [thread:$0]  %s289, 64, %s291, %s275
        $region40: #{tpu_custom_call.1} parent=27 // pred_fallthru
          _
      $region28: #{tpu_custom_call.1} parent=5 // pred_fallthru
        _
      %p294 = scmp.le.s32.totalorder 2, %s17
      // Predicated region
      $region41: #{tpu_custom_call.1} parent=5 // pred_check
        %p295 = pneg %p294
      $region42: #{tpu_custom_call.1} parent=5 // pred_check_branch
        %297 = sbr.rel (%p295) target = $region44
      $region43: #{tpu_custom_call.1} parent=5 // pred_region
        %s298 = ssub.s32 %s17, 2
        // Predicated region
        $region45: #{tpu_custom_call.1} parent=43 // pred_check
          %p299 = pneg %p116
        $region46: #{tpu_custom_call.1} parent=43 // pred_check_branch
          %301 = sbr.rel (%p299) target = $region48
        $region47: #{tpu_custom_call.1} parent=43 // pred_region
          %s302 = sand.u32 %s101, 1
          %s303 = scalar_lea.sflag [#allocation4], %s302
          %s304 = sand.u32 %s101, 1
          %s305 = smul.addr %s304, 4
          %s306 = scalar_lea.vmem [#allocation7], %s305
          %308 = dma.done %s303, 64
        $region48: #{tpu_custom_call.1} parent=43 // pred_fallthru
          _
      $region44: #{tpu_custom_call.1} parent=5 // pred_fallthru
        _
    $region6: #{tpu_custom_call.1} parent=1 // loop_footer
      %s21 = sadd.s32 1, %s17
    $region7: #{tpu_custom_call.1} parent=1 // loop_footer_branch
      %16 = sbr.rel target = $region3
    $region8: #{tpu_custom_call.1} parent=1 // loop_exit
      _
    %309 = vsyncpa [#allocation3], 1
    %s310 = scalar_lea.sflag [#allocation3], 1
    %311 = vsyncpa %s310, 1
    %312 = vsyncpa [#allocation6], 1
    %s313 = scalar_lea.sflag [#allocation6], 1
    %314 = vsyncpa %s313, 1
    %315 = vsyncpa [#allocation4], 1
    %s316 = scalar_lea.sflag [#allocation4], 1
    %317 = vsyncpa %s316, 1

</llo_original>
